<compile_context>
chip_gen: v5e
topology: v5e:2x2
jax: 0.10.0
libtpu: 0.0.40
codegen_flags: <defaults>
</compile_context>

<pallas_src>
import functools

import jax
import jax.numpy as jnp
from jax.experimental import pallas as pl
from jax.experimental.pallas import tpu as pltpu


def _round_up(x, m):
    return ((x + m - 1) // m) * m


def _ce_kernel(num_classes, ignore_index, logits_ref, labels_ref, loss_ref, sums_ref):
    """Per-pixel cross entropy on dense (S, 128) slabs.

    logits_ref: (1, C, S, 128)  logits (class axis on a leading block dim)
    labels_ref: (1, S, 128)     int32 labels
    loss_ref:   (1, S, 128)     f32 CE per pixel (0 where label == ignore_index)
    sums_ref:   (1, 1, 8, 128)  f32 per-tile lane-partial sums (row-broadcast)
    """
    labels = labels_ref[0]                                     # (S, 128)

    # Pass 1: running max over the small static class axis.  Each class slab is
    # a contiguous, (8,128)-aligned (S, 128) block -> full vreg occupancy.
    m = logits_ref[0, 0].astype(jnp.float32)
    for c in range(1, num_classes):
        m = jnp.maximum(m, logits_ref[0, c].astype(jnp.float32))

    # Pass 2: stable sum-exp + gather-by-compare of the labeled logit.
    # Re-loading each class slab from VMEM is nearly free (3 vld/cycle) and
    # keeps live temporaries small.
    s = jnp.zeros_like(m)
    picked = jnp.zeros_like(m)
    for c in range(num_classes):
        lc = logits_ref[0, c].astype(jnp.float32)
        s = s + jnp.exp(lc - m)
        picked = jnp.where(labels == c, lc, picked)

    loss = (m - picked) + jnp.log(s)                           # logsumexp - x[label]
    loss = jnp.where(labels != ignore_index, loss, 0.0)
    loss_ref[0] = loss.astype(loss_ref.dtype)

    # Fused partial sums for the plain mean: reduce only across sublanes (XLU)
    # to lane-wise partials, broadcast over the 8 output sublanes (host reads
    # row 0).  Padded / ignored pixels are already exactly 0.
    psum = jnp.sum(loss, axis=0, keepdims=True)                # (1, 128)
    sums_ref[0, 0] = jnp.broadcast_to(psum, (8, 128))


def _pick_row_tile(num_rows, batch, num_classes, itemsize,
                   vmem_budget_bytes=12 * 1024 * 1024, min_grid_steps=8):
    """Largest multiple-of-8 divisor of num_rows under a VMEM / megacore cap."""
    # Per row of 128 pixels: double-buffered logits + labels + loss blocks,
    # plus ~4 live f32 slabs of in-kernel temporaries (m, s, picked, loss).
    bytes_per_row = 128 * (2 * (num_classes * itemsize + 4 + 4) + 4 * 4)
    s_max = max(vmem_budget_bytes // bytes_per_row, 8)
    # Keep >= min_grid_steps total grid steps so both v7x TensorCores get work;
    # no effect on single-TC v5e/v6e beyond smaller (still near-roofline) tiles.
    tiles_wanted = max(-(-min_grid_steps // max(batch, 1)), 1)
    s_max = min(s_max, max(num_rows // tiles_wanted, 8))
    s_max = max((s_max // 8) * 8, 8)
    for s in range(s_max, 7, -8):
        if num_rows % s == 0:
            return s
    return 8  # num_rows is always a multiple of 8, so 8 always divides.


def _per_pixel_ce(logits, labels, ignore_index, row_tile):
    """logits (N, C, R, 128), labels (N, R, 128) int32 ->
    (loss (N, R, 128) f32, per-tile partial sums (N, R//row_tile, 8, 128) f32)."""
    n, c, r, _ = logits.shape
    assert r % row_tile == 0 and row_tile % 8 == 0
    num_tiles = r // row_tile

    kernel = functools.partial(_ce_kernel, c, ignore_index)

    return pl.pallas_call(
        kernel,
        out_shape=(
            jax.ShapeDtypeStruct((n, r, 128), jnp.float32),
            jax.ShapeDtypeStruct((n, num_tiles, 8, 128), jnp.float32),
        ),
        grid=(n, num_tiles),
        in_specs=[
            pl.BlockSpec((1, c, row_tile, 128), lambda i, t: (i, 0, t, 0)),
            pl.BlockSpec((1, row_tile, 128), lambda i, t: (i, t, 0)),
        ],
        out_specs=(
            pl.BlockSpec((1, row_tile, 128), lambda i, t: (i, t, 0)),
            pl.BlockSpec((1, 1, 8, 128), lambda i, t: (i, t, 0, 0)),
        ),
        compiler_params=pltpu.CompilerParams(
            dimension_semantics=("parallel", "parallel"),
            # Raises v5e's 16 MiB scoped default; stays well under half of
            # v7x's 64 MiB physical VMEM.
            vmem_limit_bytes=32 * 1024 * 1024,
        ),
    )(logits, labels)


def ce_ohem(pred, gt, top_ratio=0.3, top_weight=1.0, ignore_index=-1):
    """Forward pass of CE_OHEM.

    pred: (N, C, H, W) float logits (NCHW, matching the PyTorch module)
    gt:   (N, H, W)    integer labels (ignore_index marks ignored pixels)
    returns scalar: loss.mean() + top_weight * topk(loss).mean()
    """
    n, c, h, w = pred.shape
    num_pixels = h * w
    total = n * num_pixels

    # Native NCHW -> (N, C, P): pure reshape, no transpose.
    logits = pred.reshape(n, c, num_pixels)
    labels = gt.astype(jnp.int32).reshape(n, num_pixels)

    # Pad the pixel axis only to a multiple of 8*128 so the dense reshape below
    # yields sublane-aligned rows.  At most 1023 junk pixels (labels carry
    # ignore_index -> exactly zero loss); for typical segmentation shapes
    # (P % 1024 == 0) this is a no-op and nothing is copied.
    padded = _round_up(num_pixels, 8 * 128)
    if padded != num_pixels:
        pad = padded - num_pixels
        logits = jnp.pad(logits, ((0, 0), (0, 0), (0, pad)))
        labels = jnp.pad(labels, ((0, 0), (0, pad)), constant_values=ignore_index)

    rows = padded // 128
    logits = logits.reshape(n, c, rows, 128)   # pixels -> dense (rows, 128) slabs
    labels = labels.reshape(n, rows, 128)

    row_tile = _pick_row_tile(rows, n, c, jnp.dtype(pred.dtype).itemsize)
    loss, sums = _per_pixel_ce(logits, labels, ignore_index, row_tile)

    # Plain mean, fused: the kernel emitted per-tile lane-partial sums so the
    # full (N, P) loss array is not re-read here.  Ignored / padded pixels
    # contribute 0 to the numerator but the denominator is the ORIGINAL pixel
    # count, matching nn.CrossEntropyLoss(reduce=False).mean().
    mean_all = sums[:, :, 0, :].sum() / total

    # OHEM term.  top_k runs directly on the padded loss (contiguous reshape,
    # no copy): padded entries are exactly 0, CE >= 0 and topk_num <= total,
    # so padded zeros can never displace a real top-k value.
    topk_num = max(int(top_ratio * total), 1)
    topk_vals = jax.lax.top_k(loss.reshape(-1), topk_num)[0]
    # TODO(synk): for production-size inputs, replace lax.top_k (full sort over
    # 30% of all pixels) with a histogram/threshold selection (per-tile loss
    # histogram fused into the kernel, cumulative-count threshold, one
    # streaming ">= tau" pass with count-corrected tie handling).
    # TODO(synk): on v5e, if xprof shows exposed DMA between grid steps, add
    # pipeline_mode=pl.Buffered(3) on the logits in_spec; optionally feed bf16
    # logits (kernel already upcasts to f32) to halve HBM traffic.
    return mean_all + top_weight * topk_vals.mean()


def _reference(pred, gt, top_ratio=0.3, top_weight=1.0, ignore_index=-1):
    """Pure-JAX reference mirroring nn.CrossEntropyLoss(reduce=False)."""
    n, c, h, w = pred.shape
    logits = jnp.transpose(pred, (0, 2, 3, 1)).reshape(-1, c).astype(jnp.float32)
    labels = gt.astype(jnp.int32).reshape(-1)
    logp = jax.nn.log_softmax(logits, axis=-1)
    picked = jnp.take_along_axis(
        logp, jnp.clip(labels, 0, c - 1)[:, None], axis=-1)[:, 0]
    loss = jnp.where(labels == ignore_index, 0.0, -picked)
    topk_num = max(int(top_ratio * loss.shape[0]), 1)
    topk_vals = jax.lax.top_k(loss, topk_num)[0]
    return loss.mean() + top_weight * topk_vals.mean()


if __name__ == "__main__":
    key = jax.random.PRNGKey(0)

    # Case 1: lane-aligned spatial size.
    k_pred, k_gt, k_ign, key = jax.random.split(key, 4)
    N, C, H, W = 2, 4, 16, 16
    pred = jax.random.normal(k_pred, (N, C, H, W), dtype=jnp.float32)
    gt = jax.random.randint(k_gt, (N, H, W), 0, C, dtype=jnp.int32)
    gt = jnp.where(jax.random.uniform(k_ign, (N, H, W)) < 0.05, -1, gt)

    out = jax.block_until_ready(ce_ohem(pred, gt))
    ref = jax.block_until_ready(_reference(pred, gt))
    assert jnp.isfinite(out), "non-finite loss"
    assert abs(float(out) - float(ref)) < 1e-4, (float(out), float(ref))

    # Case 2: awkward spatial size (exercises the ignore_index padding path).
    k_pred2, k_gt2, k_ign2, key = jax.random.split(key, 4)
    N2, C2, H2, W2 = 2, 4, 10, 10
    pred2 = jax.random.normal(k_pred2, (N2, C2, H2, W2), dtype=jnp.float32)
    gt2 = jax.random.randint(k_gt2, (N2, H2, W2), 0, C2, dtype=jnp.int32)
    gt2 = jnp.where(jax.random.uniform(k_ign2, (N2, H2, W2)) < 0.05, -1, gt2)

    out2 = jax.block_until_ready(ce_ohem(pred2, gt2))
    ref2 = jax.block_until_ready(_reference(pred2, gt2))
    assert jnp.isfinite(out2), "non-finite loss (padded case)"
    assert abs(float(out2) - float(ref2)) < 1e-4, (float(out2), float(ref2))

    print("KERNEL_OK")
</pallas_src>

<mosaic_0001>
module attributes {stable_mosaic.version = 11 : i64} {
  func.func @_ce_kernel(%arg0: i32, %arg1: i32, %arg2: memref<1x4x8x128xf32, #tpu.memory_space<vmem>>, %arg3: memref<1x8x128xi32, #tpu.memory_space<vmem>>, %arg4: memref<1x8x128xf32, #tpu.memory_space<vmem>>, %arg5: memref<1x1x8x128xf32, #tpu.memory_space<vmem>>) attributes {dimension_semantics = [#tpu.dimension_semantics<parallel>, #tpu.dimension_semantics<parallel>], iteration_bounds = array<i64: 2, 1>, scalar_prefetch = 0 : i64, scratch_operands = 0 : i64, tpu.core_type = #tpu.core_type<tc>, window_params = [{transform_indices = @transform_0, window_bounds = array<i64: 1, 4, 8, 128>}, {transform_indices = @transform_1, window_bounds = array<i64: 1, 8, 128>}, {transform_indices = @transform_2, window_bounds = array<i64: 1, 8, 128>}, {transform_indices = @transform_3, window_bounds = array<i64: 1, 1, 8, 128>}]} {
    %c0 = arith.constant 0 : index
    %c0_0 = arith.constant 0 : index
    %c0_1 = arith.constant 0 : index
    %0 = vector.load %arg3[%c0, %c0_0, %c0_1] : memref<1x8x128xi32, #tpu.memory_space<vmem>>, vector<1x8x128xi32>
    %1 = vector.shape_cast %0 : vector<1x8x128xi32> to vector<8x128xi32>
    %c0_2 = arith.constant 0 : index
    %c0_3 = arith.constant 0 : index
    %c0_4 = arith.constant 0 : index
    %c0_5 = arith.constant 0 : index
    %2 = vector.load %arg2[%c0_2, %c0_3, %c0_4, %c0_5] : memref<1x4x8x128xf32, #tpu.memory_space<vmem>>, vector<1x1x8x128xf32>
    %3 = vector.shape_cast %2 : vector<1x1x8x128xf32> to vector<8x128xf32>
    %c0_6 = arith.constant 0 : index
    %c1 = arith.constant 1 : index
    %c0_7 = arith.constant 0 : index
    %c0_8 = arith.constant 0 : index
    %4 = vector.load %arg2[%c0_6, %c1, %c0_7, %c0_8] : memref<1x4x8x128xf32, #tpu.memory_space<vmem>>, vector<1x1x8x128xf32>
    %5 = vector.shape_cast %4 : vector<1x1x8x128xf32> to vector<8x128xf32>
    %6 = arith.maximumf %3, %5 : vector<8x128xf32>
    %c0_9 = arith.constant 0 : index
    %c2 = arith.constant 2 : index
    %c0_10 = arith.constant 0 : index
    %c0_11 = arith.constant 0 : index
    %7 = vector.load %arg2[%c0_9, %c2, %c0_10, %c0_11] : memref<1x4x8x128xf32, #tpu.memory_space<vmem>>, vector<1x1x8x128xf32>
    %8 = vector.shape_cast %7 : vector<1x1x8x128xf32> to vector<8x128xf32>
    %9 = arith.maximumf %6, %8 : vector<8x128xf32>
    %c0_12 = arith.constant 0 : index
    %c3 = arith.constant 3 : index
    %c0_13 = arith.constant 0 : index
    %c0_14 = arith.constant 0 : index
    %10 = vector.load %arg2[%c0_12, %c3, %c0_13, %c0_14] : memref<1x4x8x128xf32, #tpu.memory_space<vmem>>, vector<1x1x8x128xf32>
    %11 = vector.shape_cast %10 : vector<1x1x8x128xf32> to vector<8x128xf32>
    %12 = arith.maximumf %9, %11 : vector<8x128xf32>
    %cst = arith.constant 0.000000e+00 : f32
    %13 = vector.broadcast %cst : f32 to vector<8x128xf32>
    %cst_15 = arith.constant 0.000000e+00 : f32
    %14 = vector.broadcast %cst_15 : f32 to vector<8x128xf32>
    %c0_16 = arith.constant 0 : index
    %c0_17 = arith.constant 0 : index
    %c0_18 = arith.constant 0 : index
    %c0_19 = arith.constant 0 : index
    %15 = vector.load %arg2[%c0_16, %c0_17, %c0_18, %c0_19] : memref<1x4x8x128xf32, #tpu.memory_space<vmem>>, vector<1x1x8x128xf32>
    %16 = vector.shape_cast %15 : vector<1x1x8x128xf32> to vector<8x128xf32>
    %17 = arith.subf %16, %12 : vector<8x128xf32>
    %18 = math.exp %17 : vector<8x128xf32>
    %19 = arith.addf %13, %18 : vector<8x128xf32>
    %c0_i32 = arith.constant 0 : i32
    %20 = vector.broadcast %c0_i32 : i32 to vector<8x128xi32>
    %21 = arith.cmpi eq, %1, %20 : vector<8x128xi32>
    %22 = arith.select %21, %16, %14 : vector<8x128xi1>, vector<8x128xf32>
    %c0_20 = arith.constant 0 : index
    %c1_21 = arith.constant 1 : index
    %c0_22 = arith.constant 0 : index
    %c0_23 = arith.constant 0 : index
    %23 = vector.load %arg2[%c0_20, %c1_21, %c0_22, %c0_23] : memref<1x4x8x128xf32, #tpu.memory_space<vmem>>, vector<1x1x8x128xf32>
    %24 = vector.shape_cast %23 : vector<1x1x8x128xf32> to vector<8x128xf32>
    %25 = arith.subf %24, %12 : vector<8x128xf32>
    %26 = math.exp %25 : vector<8x128xf32>
    %27 = arith.addf %19, %26 : vector<8x128xf32>
    %c1_i32 = arith.constant 1 : i32
    %28 = vector.broadcast %c1_i32 : i32 to vector<8x128xi32>
    %29 = arith.cmpi eq, %1, %28 : vector<8x128xi32>
    %30 = arith.select %29, %24, %22 : vector<8x128xi1>, vector<8x128xf32>
    %c0_24 = arith.constant 0 : index
    %c2_25 = arith.constant 2 : index
    %c0_26 = arith.constant 0 : index
    %c0_27 = arith.constant 0 : index
    %31 = vector.load %arg2[%c0_24, %c2_25, %c0_26, %c0_27] : memref<1x4x8x128xf32, #tpu.memory_space<vmem>>, vector<1x1x8x128xf32>
    %32 = vector.shape_cast %31 : vector<1x1x8x128xf32> to vector<8x128xf32>
    %33 = arith.subf %32, %12 : vector<8x128xf32>
    %34 = math.exp %33 : vector<8x128xf32>
    %35 = arith.addf %27, %34 : vector<8x128xf32>
    %c2_i32 = arith.constant 2 : i32
    %36 = vector.broadcast %c2_i32 : i32 to vector<8x128xi32>
    %37 = arith.cmpi eq, %1, %36 : vector<8x128xi32>
    %38 = arith.select %37, %32, %30 : vector<8x128xi1>, vector<8x128xf32>
    %c0_28 = arith.constant 0 : index
    %c3_29 = arith.constant 3 : index
    %c0_30 = arith.constant 0 : index
    %c0_31 = arith.constant 0 : index
    %39 = vector.load %arg2[%c0_28, %c3_29, %c0_30, %c0_31] : memref<1x4x8x128xf32, #tpu.memory_space<vmem>>, vector<1x1x8x128xf32>
    %40 = vector.shape_cast %39 : vector<1x1x8x128xf32> to vector<8x128xf32>
    %41 = arith.subf %40, %12 : vector<8x128xf32>
    %42 = math.exp %41 : vector<8x128xf32>
    %43 = arith.addf %35, %42 : vector<8x128xf32>
    %c3_i32 = arith.constant 3 : i32
    %44 = vector.broadcast %c3_i32 : i32 to vector<8x128xi32>
    %45 = arith.cmpi eq, %1, %44 : vector<8x128xi32>
    %46 = arith.select %45, %40, %38 : vector<8x128xi1>, vector<8x128xf32>
    %47 = arith.subf %12, %46 : vector<8x128xf32>
    %48 = math.log %43 : vector<8x128xf32>
    %49 = arith.addf %47, %48 : vector<8x128xf32>
    %c-1_i32 = arith.constant -1 : i32
    %50 = vector.broadcast %c-1_i32 : i32 to vector<8x128xi32>
    %51 = arith.cmpi ne, %1, %50 : vector<8x128xi32>
    %cst_32 = arith.constant 0.000000e+00 : f32
    %52 = vector.broadcast %cst_32 : f32 to vector<8x128xf32>
    %53 = arith.select %51, %49, %52 : vector<8x128xi1>, vector<8x128xf32>
    %c0_33 = arith.constant 0 : index
    %c0_34 = arith.constant 0 : index
    %c0_35 = arith.constant 0 : index
    %54 = vector.load %arg4[%c0_33, %c0_34, %c0_35] : memref<1x8x128xf32, #tpu.memory_space<vmem>>, vector<1x8x128xf32>
    %55 = vector.shape_cast %54 : vector<1x8x128xf32> to vector<8x128xf32>
    %56 = vector.shape_cast %53 : vector<8x128xf32> to vector<1x8x128xf32>
    tpu.vector_store %arg4[%c0_33, %c0_34, %c0_35], %56 {strides = array<i32>} : memref<1x8x128xf32, #tpu.memory_space<vmem>>, vector<1x8x128xf32>,
    %cst_36 = arith.constant dense<0.000000e+00> : vector<128xf32>
    %57 = vector.multi_reduction <add>, %53, %cst_36 [0] : vector<8x128xf32> to vector<128xf32>
    %58 = vector.shape_cast %57 : vector<128xf32> to vector<1x128xf32>
    %59 = vector.shape_cast %58 : vector<1x128xf32> to vector<1x128xf32>
    %60 = vector.broadcast %59 : vector<1x128xf32> to vector<8x128xf32>
    %c0_37 = arith.constant 0 : index
    %c0_38 = arith.constant 0 : index
    %c0_39 = arith.constant 0 : index
    %c0_40 = arith.constant 0 : index
    %61 = vector.load %arg5[%c0_37, %c0_38, %c0_39, %c0_40] : memref<1x1x8x128xf32, #tpu.memory_space<vmem>>, vector<1x1x8x128xf32>
    %62 = vector.shape_cast %61 : vector<1x1x8x128xf32> to vector<8x128xf32>
    %63 = vector.shape_cast %60 : vector<8x128xf32> to vector<1x1x8x128xf32>
    tpu.vector_store %arg5[%c0_37, %c0_38, %c0_39, %c0_40], %63 {strides = array<i32>} : memref<1x1x8x128xf32, #tpu.memory_space<vmem>>, vector<1x1x8x128xf32>,
    return
  }
  func.func @transform_0(%arg0: i32, %arg1: i32) -> (i32, i32, i32, i32) {
    %c0_i32 = arith.constant 0 : i32
    %c0_i32_0 = arith.constant 0 : i32
    %c0_i32_1 = arith.constant 0 : i32
    return %arg0, %c0_i32, %arg1, %c0_i32_0 : i32, i32, i32, i32
  }
  func.func @transform_1(%arg0: i32, %arg1: i32) -> (i32, i32, i32) {
    %c0_i32 = arith.constant 0 : i32
    %c0_i32_0 = arith.constant 0 : i32
    return %arg0, %arg1, %c0_i32 : i32, i32, i32
  }
  func.func @transform_2(%arg0: i32, %arg1: i32) -> (i32, i32, i32) {
    %c0_i32 = arith.constant 0 : i32
    %c0_i32_0 = arith.constant 0 : i32
    return %arg0, %arg1, %c0_i32 : i32, i32, i32
  }
  func.func @transform_3(%arg0: i32, %arg1: i32) -> (i32, i32, i32, i32) {
    %c0_i32 = arith.constant 0 : i32
    %c0_i32_0 = arith.constant 0 : i32
    %c0_i32_1 = arith.constant 0 : i32
    return %arg0, %arg1, %c0_i32, %c0_i32_0 : i32, i32, i32, i32
  }
}

</mosaic_0001>

<llo_original>
// kernel: tpu_custom_call.1
$region0: #{tpu_custom_call.1}
  #allocation0 [shape = 'u32[]', space=smem, size = 0x4, offset = 0x4, fixed_abs, tag = 'smem constant byte address 0x4 - core index']
  #allocation1 [shape = 'u32[72,128]{1,0:T(1,128)}', space=vmem, size = 0x9000, scoped, tag = 'internal scratch']
  %s0 = inlined_call_operand.hbm [shape: f32[2,4,8,128], index: 0, kind: input, shape index: {}]
  %s1 = inlined_call_operand.hbm [shape: s32[2,8,128], index: 1, kind: input, shape index: {}]
  %s2 = inlined_call_operand.hbm [shape: f32[2,8,128], index: 2, kind: output, shape index: {0}]
  %s3 = inlined_call_operand.hbm [shape: f32[2,1,8,128], index: 3, kind: output, shape index: {1}]
  %4 = xla_tuple %s2, %s3
  %s5 = sld [smem:[#allocation0]]
  $region57: #{tpu_custom_call.1} parent=0
    _
  %s7 = ssub.s32 1, %s5
  %s8 = scalar_select 0, %s7, %s5
  $region1: #{tpu_custom_call.1} parent=0
    #allocation2 [shape = 'u8[32768]{0}', space=vmem, size = 0x8000, scoped, tag = 'input window, operand 0']
    #allocation3 [shape = 's32[2]{0}', space=sflag, size = 0x8, scoped, tag = 'scoped memory for tpu_custom_call.1']
    #allocation4 [shape = 's32[2]{0}', space=sflag, size = 0x8, scoped, tag = 'scoped memory for tpu_custom_call.1']
    #allocation5 [shape = 'u8[8192]{0}', space=vmem, size = 0x2000, scoped, tag = 'input window, operand 1']
    #allocation6 [shape = 's32[2]{0}', space=sflag, size = 0x8, scoped, tag = 'scoped memory for tpu_custom_call.1']
    #allocation7 [shape = 'u8[8192]{0}', space=vmem, size = 0x2000, scoped, tag = 'output window, operand 0']
    #allocation8 [shape = 'u8[8192]{0}', space=vmem, size = 0x2000, scoped, tag = 'output window, operand 1']
    #allocation9 [shape = 's32[2]{0}', space=sflag, size = 0x8, scoped, tag = 'scoped memory for tpu_custom_call.1']
    %9 = vsyncpa [#allocation3], 0
    %s10 = scalar_lea.sflag [#allocation3], 1
    %11 = vsyncpa %s10, 0
    %12 = vsyncpa [#allocation6], 0
    %s13 = scalar_lea.sflag [#allocation6], 1
    %14 = vsyncpa %s13, 0
    %15 = vsyncpa [#allocation4], 0
    %s16 = scalar_lea.sflag [#allocation4], 1
    %17 = vsyncpa %s16, 0
    %18 = vsyncpa [#allocation9], 0
    %s19 = scalar_lea.sflag [#allocation9], 1
    %20 = vsyncpa %s19, 0
    loop: start=0, step=1, limit=4
    $region2: #{tpu_custom_call.1} parent=1 // loop_pre_header
      _
    $region3: #{tpu_custom_call.1} parent=1 // loop_header
      %s22 = sphi 0, %s26
      %p23 = scmp.ge.s32.totalorder %s22, 4
      %s29 = sphi 0, %s41
      %s30 = sphi 0, %s37
      %s31 = sphi 0, %s29
      %s32 = sphi 0, %s30
      %s33 = sphi 0, %s31
      %s34 = sphi 0, %s32
      %s46 = sphi 0, %s48
      %s49 = sphi 0, %s46
      %s50 = sphi 0, %s49
      %s66 = sphi 0, %s50
      %s74 = sphi 0, %s76
      %s77 = sphi 0, %s74
      %s78 = sphi 0, %s77
      %s94 = sphi 0, %s78
      %s102 = sphi 0, %s104
      %s105 = sphi 0, %s102
      %s106 = sphi 0, %s105
      %s122 = sphi 0, %s106
      %s130 = sphi 0, %s132
      %s133 = sphi 0, %s130
      %s134 = sphi 0, %s133
      %s150 = sphi 0, %s134
    $region4: #{tpu_custom_call.1} parent=1 // loop_header_branch
      %25 = sbr.rel (%p23) target = $region8
    $region5: #{tpu_custom_call.1} parent=1 // loop_body
      %s27 = ssub.s32 %s22, 1
      %s28 = ssub.s32 %s22, 2
      %s35 = sadd.s32 1, %s30
      %p36 = scmp.ge.s32.totalorder %s35, 1
      %s37 = scalar_select %p36, 0, %s35
      %s38 = sadd.s32 1, %s29
      %s39 = scalar_select %p36, %s38, %s29
      %p40 = scmp.ge.s32.totalorder %s39, 2
      %s41 = scalar_select %p40, 0, %s39
      %s42 = ssub.s32 %s29, %s41
      %s43 = ssub.s32 %s30, %s37
      %s44 = sor.u32 %s42, %s43
      %p45 = scmp.eq.s32.totalorder %s44, 0
      %s47 = sadd.s32 %s46, 1
      %s48 = scalar_select %p45, %s46, %s47
      %p51 = pneg %p45
      %p52 = scmp.eq.s32.totalorder %s22, 1
      %p53 = por %p51, %p52
      %p54 = scmp.ne.s32.totalorder %s46, %s49
      %p55 = scmp.eq.s32.totalorder %s22, 0
      %p56 = por %p54, %p55
      %p57 = scmp.ne.s32.totalorder %s46, %s49
      %p58 = scmp.eq.s32.totalorder %s27, 1
      %p59 = por %p57, %p58
      %p60 = scmp.ne.s32.totalorder %s49, %s50
      %p61 = scmp.eq.s32.totalorder %s27, 0
      %p62 = por %p60, %p61
      %p63 = scmp.ne.s32.totalorder %s49, %s50
      %p64 = scmp.eq.s32.totalorder %s28, 1
      %p65 = por %p63, %p64
      %p67 = scmp.ne.s32.totalorder %s50, %s66
      %p68 = scmp.eq.s32.totalorder %s28, 0
      %p69 = por %p67, %p68
      %s70 = ssub.s32 %s29, %s41
      %s71 = ssub.s32 %s30, %s37
      %s72 = sor.u32 %s70, %s71
      %p73 = scmp.eq.s32.totalorder %s72, 0
      %s75 = sadd.s32 %s74, 1
      %s76 = scalar_select %p73, %s74, %s75
      %p79 = pneg %p73
      %p80 = scmp.eq.s32.totalorder %s22, 1
      %p81 = por %p79, %p80
      %p82 = scmp.ne.s32.totalorder %s74, %s77
      %p83 = scmp.eq.s32.totalorder %s22, 0
      %p84 = por %p82, %p83
      %p85 = scmp.ne.s32.totalorder %s74, %s77
      %p86 = scmp.eq.s32.totalorder %s27, 1
      %p87 = por %p85, %p86
      %p88 = scmp.ne.s32.totalorder %s77, %s78
      %p89 = scmp.eq.s32.totalorder %s27, 0
      %p90 = por %p88, %p89
      %p91 = scmp.ne.s32.totalorder %s77, %s78
      %p92 = scmp.eq.s32.totalorder %s28, 1
      %p93 = por %p91, %p92
      %p95 = scmp.ne.s32.totalorder %s78, %s94
      %p96 = scmp.eq.s32.totalorder %s28, 0
      %p97 = por %p95, %p96
      %s98 = ssub.s32 %s29, %s41
      %s99 = ssub.s32 %s30, %s37
      %s100 = sor.u32 %s98, %s99
      %p101 = scmp.eq.s32.totalorder %s100, 0
      %s103 = sadd.s32 %s102, 1
      %s104 = scalar_select %p101, %s102, %s103
      %p107 = pneg %p101
      %p108 = scmp.eq.s32.totalorder %s22, 1
      %p109 = por %p107, %p108
      %p110 = scmp.ne.s32.totalorder %s102, %s105
      %p111 = scmp.eq.s32.totalorder %s22, 0
      %p112 = por %p110, %p111
      %p113 = scmp.ne.s32.totalorder %s102, %s105
      %p114 = scmp.eq.s32.totalorder %s27, 1
      %p115 = por %p113, %p114
      %p116 = scmp.ne.s32.totalorder %s105, %s106
      %p117 = scmp.eq.s32.totalorder %s27, 0
      %p118 = por %p116, %p117
      %p119 = scmp.ne.s32.totalorder %s105, %s106
      %p120 = scmp.eq.s32.totalorder %s28, 1
      %p121 = por %p119, %p120
      %p123 = scmp.ne.s32.totalorder %s106, %s122
      %p124 = scmp.eq.s32.totalorder %s28, 0
      %p125 = por %p123, %p124
      %s126 = ssub.s32 %s29, %s41
      %s127 = ssub.s32 %s30, %s37
      %s128 = sor.u32 %s126, %s127
      %p129 = scmp.eq.s32.totalorder %s128, 0
      %s131 = sadd.s32 %s130, 1
      %s132 = scalar_select %p129, %s130, %s131
      %p135 = pneg %p129
      %p136 = scmp.eq.s32.totalorder %s22, 1
      %p137 = por %p135, %p136
      %p138 = scmp.ne.s32.totalorder %s130, %s133
      %p139 = scmp.eq.s32.totalorder %s22, 0
      %p140 = por %p138, %p139
      %p141 = scmp.ne.s32.totalorder %s130, %s133
      %p142 = scmp.eq.s32.totalorder %s27, 1
      %p143 = por %p141, %p142
      %p144 = scmp.ne.s32.totalorder %s133, %s134
      %p145 = scmp.eq.s32.totalorder %s27, 0
      %p146 = por %p144, %p145
      %p147 = scmp.ne.s32.totalorder %s133, %s134
      %p148 = scmp.eq.s32.totalorder %s28, 1
      %p149 = por %p147, %p148
      %p151 = scmp.ne.s32.totalorder %s134, %s150
      %p152 = scmp.eq.s32.totalorder %s28, 0
      %p153 = por %p151, %p152
      %p154 = scmp.le.s32.totalorder 1, %s22
      %p155 = scmp.lt.s32.totalorder %s22, 3
      %p156 = pnand %p154, %p155
      %p157 = pneg %p156
      // Predicated region
      $region9: #{tpu_custom_call.1} parent=5 // pred_check
        _
      $region10: #{tpu_custom_call.1} parent=5 // pred_check_branch
        %159 = sbr.rel (%p156) target = $region12
      $region11: #{tpu_custom_call.1} parent=5 // pred_region
        %s160 = ssub.s32 %s22, 1
      $region12: #{tpu_custom_call.1} parent=5 // pred_fallthru
        _
      %p161 = scmp.lt.s32.totalorder %s22, 2
      // Predicated region
      $region13: #{tpu_custom_call.1} parent=5 // pred_check
        %p162 = pneg %p161
      $region14: #{tpu_custom_call.1} parent=5 // pred_check_branch
        %164 = sbr.rel (%p162) target = $region16
      $region15: #{tpu_custom_call.1} parent=5 // pred_region
        // Predicated region
        $region17: #{tpu_custom_call.1} parent=15 // pred_check
          %p165 = pneg %p56
        $region18: #{tpu_custom_call.1} parent=15 // pred_check_branch
          %167 = sbr.rel (%p165) target = $region20
        $region19: #{tpu_custom_call.1} parent=15 // pred_region
          %s168 = sand.u32 %s46, 1
          %s169 = scalar_lea.sflag [#allocation3], %s168
          %s170 = sand.u32 %s46, 1
          %s171 = smul.addr %s170, 32
          %s172 = scalar_lea.vmem [#allocation2], %s171
          %174 = vsyncadd %s169, 0
          %s175 = smul.addr %s29, 4
          %s176 = sadd.s32 %s30, %s175
          %s177 = smul.addr %s176, 8
          %s178 = scalar_lea.hbm %s0, %s177
          %s179 = sshll.u32 %s178, 4
          %s180 = int_to_ptr.hbm [resolvable:$true] %s179
          %s181 = sshll.u32 %s172, 4
          %s182 = int_to_ptr.vmem [resolvable:$true] %s181
          %187 = dma.hbm_to_vmem [thread:$0]  %s180, 512, %s182, %s169, 128, 128, 8
        $region20: #{tpu_custom_call.1} parent=15 // pred_fallthru
          _
        // Predicated region
        $region21: #{tpu_custom_call.1} parent=15 // pred_check
          %p188 = pneg %p84
        $region22: #{tpu_custom_call.1} parent=15 // pred_check_branch
          %190 = sbr.rel (%p188) target = $region24
        $region23: #{tpu_custom_call.1} parent=15 // pred_region
          %s191 = sand.u32 %s74, 1
          %s192 = scalar_lea.sflag [#allocation6], %s191
          %s193 = sand.u32 %s74, 1
          %s194 = smul.addr %s193, 8
          %s195 = scalar_lea.vmem [#allocation5], %s194
          %197 = vsyncadd %s192, 0
          %s198 = sadd.s32 %s30, %s29
          %s199 = smul.addr %s198, 8
          %s200 = scalar_lea.hbm %s1, %s199
          %s202 = sshll.u32 %s200, 4
          %s203 = int_to_ptr.hbm [resolvable:$true] %s202
          %s204 = sshll.u32 %s195, 4
          %s205 = int_to_ptr.vmem [resolvable:$true] %s204
          %207 = dma.hbm_to_vmem [thread:$0]  %s203, 128, %s205, %s192
        $region24: #{tpu_custom_call.1} parent=15 // pred_fallthru
          _
      $region16: #{tpu_custom_call.1} parent=5 // pred_fallthru
        _
      %p208 = scmp.le.s32.totalorder 1, %s22
      %p209 = scmp.lt.s32.totalorder %s22, 3
      %p210 = pnand %p208, %p209
      %p211 = pneg %p210
      // Predicated region
      $region25: #{tpu_custom_call.1} parent=5 // pred_check
        _
      $region26: #{tpu_custom_call.1} parent=5 // pred_check_branch
        %213 = sbr.rel (%p210) target = $region28
      $region27: #{tpu_custom_call.1} parent=5 // pred_region
        %s214 = ssub.s32 %s22, 1
        %s215 = sand.u32 %s49, 1
        %s216 = scalar_lea.sflag [#allocation3], %s215
        %s217 = sand.u32 %s49, 1
        %s218 = smul.addr %s217, 32
        %s219 = scalar_lea.vmem [#allocation2], %s218
        // Predicated region
        $region29: #{tpu_custom_call.1} parent=27 // pred_check
          %p220 = pneg %p62
        $region30: #{tpu_custom_call.1} parent=27 // pred_check_branch
          %222 = sbr.rel (%p220) target = $region32
        $region31: #{tpu_custom_call.1} parent=27 // pred_region
          %224 = dma.done %s216, 512
        $region32: #{tpu_custom_call.1} parent=27 // pred_fallthru
          _
        %s225 = sand.u32 %s77, 1
        %s226 = scalar_lea.sflag [#allocation6], %s225
        %s227 = sand.u32 %s77, 1
        %s228 = smul.addr %s227, 8
        %s229 = scalar_lea.vmem [#allocation5], %s228
        // Predicated region
        $region33: #{tpu_custom_call.1} parent=27 // pred_check
          %p230 = pneg %p90
        $region34: #{tpu_custom_call.1} parent=27 // pred_check_branch
          %232 = sbr.rel (%p230) target = $region36
        $region35: #{tpu_custom_call.1} parent=27 // pred_region
          %234 = dma.done %s226, 128
        $region36: #{tpu_custom_call.1} parent=27 // pred_fallthru
          _
        %s235 = sand.u32 %s49, 1
        %s236 = scalar_lea.sflag [#allocation3], %s235
        %s237 = sand.u32 %s49, 1
        %s238 = smul.addr %s237, 32
        %s239 = scalar_lea.vmem [#allocation2], %s238
        %p240 = pneg %p62
        %p241 = pneg %p59
        %s242 = sand.u32 %s77, 1
        %s243 = scalar_lea.sflag [#allocation6], %s242
        %s244 = sand.u32 %s77, 1
        %s245 = smul.addr %s244, 8
        %s246 = scalar_lea.vmem [#allocation5], %s245
        %p247 = pneg %p90
        %p248 = pneg %p87
        %p249 = pneg %p118
        %p250 = pneg %p115
        %s251 = sand.u32 %s105, 1
        %s252 = scalar_lea.sflag [#allocation4], %s251
        %s253 = sand.u32 %s105, 1
        %s254 = smul.addr %s253, 8
        %s255 = scalar_lea.vmem [#allocation7], %s254
        %p256 = pneg %p146
        %p257 = pneg %p143
        %s258 = sand.u32 %s133, 1
        %s259 = scalar_lea.sflag [#allocation9], %s258
        %s260 = sand.u32 %s133, 1
        %s261 = smul.addr %s260, 8
        %s262 = scalar_lea.vmem [#allocation8], %s261
        %v263 = vld [vmem:[%s229] sm:$0xff]
        %v264 = vld [vmem:[%s219] sm:$0xff]
        %s265 = scalar_lea.vmem %s219, 8 [#allocation2]
        %v266 = vld [vmem:[%s265] sm:$0xff]
        %v267 = vmax.f32 %v264, %v266
        %s268 = scalar_lea.vmem %s219, 16 [#allocation2]
        %v269 = vld [vmem:[%s268] sm:$0xff]
        %v270 = vmax.f32 %v267, %v269
        %s271 = scalar_lea.vmem %s219, 24 [#allocation2]
        %v272 = vld [vmem:[%s271] sm:$0xff]
        %v273 = vmax.f32 %v270, %v272
        %v274 = vsub.f32 %v264, %v273
        %v275 = vmul.f32 %v274, 1.442695
        %v276 = vpow.pop %v275
        %v277 = vadd.f32 %v276, 0.0
        %vm278 = vcmp.eq.s32.totalorder %v263, 0
        %v279 = vsel %vm278, %v264, 0.0
        %v280 = vsub.f32 %v266, %v273
        %v281 = vmul.f32 %v280, 1.442695
        %v282 = vpow.pop %v281
        %v283 = vadd.f32 %v277, %v282
        %vm284 = vcmp.eq.s32.totalorder %v263, 1
        %v285 = vsel %vm284, %v266, %v279
        %v286 = vsub.f32 %v269, %v273
        %v287 = vmul.f32 %v286, 1.442695
        %v288 = vpow.pop %v287
        %v289 = vadd.f32 %v283, %v288
        %vm290 = vcmp.eq.s32.totalorder %v263, 2
        %v291 = vsel %vm290, %v269, %v285
        %v292 = vsub.f32 %v272, %v273
        %v293 = vmul.f32 %v292, 1.442695
        %v294 = vpow.pop %v293
        %v295 = vadd.f32 %v289, %v294
        %vm296 = vcmp.eq.s32.totalorder %v263, 3
        %v297 = vsel %vm296, %v272, %v291
        %v298 = vsub.f32 %v273, %v297
        %v299 = vlog2.pop %v295
        %v300 = vmul.f32 %v299, 0.6931472
        %v301 = vadd.f32 %v298, %v300
        %vm302 = vcmp.ne.s32.totalorder %v263, 4294967295
        %v303 = vsel %vm302, %v301, 0.0
        %304 = vst [vmem:[%s255] sm:$0xff] %v303
        %v305 = vrot.slane %v303, 4
        %v306 = vadd.f32 %v303, %v305
        %v307 = vrot.slane %v306, 2
        %v308 = vadd.f32 %v306, %v307
        %v309 = vrot.slane %v308, 1
        %v310 = vadd.f32 %v308, %v309
        %311 = vst [vmem:[%s262] sm:$0xff] %v310
        %s312 = sand.u32 %s105, 1
        %s313 = scalar_lea.sflag [#allocation4], %s312
        %s314 = sand.u32 %s105, 1
        %s315 = smul.addr %s314, 8
        %s316 = scalar_lea.vmem [#allocation7], %s315
        %s317 = sand.u32 %s133, 1
        %s318 = scalar_lea.sflag [#allocation9], %s317
        %s319 = sand.u32 %s133, 1
        %s320 = smul.addr %s319, 8
        %s321 = scalar_lea.vmem [#allocation8], %s320
        // Predicated region
        $region37: #{tpu_custom_call.1} parent=27 // pred_check
          %p322 = pneg %p115
        $region38: #{tpu_custom_call.1} parent=27 // pred_check_branch
          %324 = sbr.rel (%p322) target = $region40
        $region39: #{tpu_custom_call.1} parent=27 // pred_region
          %326 = vsyncadd %s313, 0
          %s327 = sadd.s32 %s32, %s31
          %s328 = smul.addr %s327, 8
          %s329 = scalar_lea.hbm %s2, %s328
          %s331 = sshll.u32 %s316, 4
          %s332 = int_to_ptr.vmem [resolvable:$true] %s331
          %s333 = sshll.u32 %s329, 4
          %s334 = int_to_ptr.hbm [resolvable:$true] %s333
          %336 = dma.vmem_to_hbm [thread:$0]  %s332, 128, %s334, %s313
        $region40: #{tpu_custom_call.1} parent=27 // pred_fallthru
          _
        // Predicated region
        $region41: #{tpu_custom_call.1} parent=27 // pred_check
          %p337 = pneg %p143
        $region42: #{tpu_custom_call.1} parent=27 // pred_check_branch
          %339 = sbr.rel (%p337) target = $region44
        $region43: #{tpu_custom_call.1} parent=27 // pred_region
          %341 = vsyncadd %s318, 0
          %s342 = sadd.s32 %s32, %s31
          %s343 = smul.addr %s342, 8
          %s344 = scalar_lea.hbm %s3, %s343
          %s346 = sshll.u32 %s321, 4
          %s347 = int_to_ptr.vmem [resolvable:$true] %s346
          %s348 = sshll.u32 %s344, 4
          %s349 = int_to_ptr.hbm [resolvable:$true] %s348
          %351 = dma.vmem_to_hbm [thread:$0]  %s347, 128, %s349, %s318
        $region44: #{tpu_custom_call.1} parent=27 // pred_fallthru
          _
      $region28: #{tpu_custom_call.1} parent=5 // pred_fallthru
        _
      %p352 = scmp.le.s32.totalorder 2, %s22
      // Predicated region
      $region45: #{tpu_custom_call.1} parent=5 // pred_check
        %p353 = pneg %p352
      $region46: #{tpu_custom_call.1} parent=5 // pred_check_branch
        %355 = sbr.rel (%p353) target = $region48
      $region47: #{tpu_custom_call.1} parent=5 // pred_region
        %s356 = ssub.s32 %s22, 2
        // Predicated region
        $region49: #{tpu_custom_call.1} parent=47 // pred_check
          %p357 = pneg %p121
        $region50: #{tpu_custom_call.1} parent=47 // pred_check_branch
          %359 = sbr.rel (%p357) target = $region52
        $region51: #{tpu_custom_call.1} parent=47 // pred_region
          %s360 = sand.u32 %s106, 1
          %s361 = scalar_lea.sflag [#allocation4], %s360
          %s362 = sand.u32 %s106, 1
          %s363 = smul.addr %s362, 8
          %s364 = scalar_lea.vmem [#allocation7], %s363
          %366 = dma.done %s361, 128
        $region52: #{tpu_custom_call.1} parent=47 // pred_fallthru
          _
        // Predicated region
        $region53: #{tpu_custom_call.1} parent=47 // pred_check
          %p367 = pneg %p149
        $region54: #{tpu_custom_call.1} parent=47 // pred_check_branch
          %369 = sbr.rel (%p367) target = $region56
        $region55: #{tpu_custom_call.1} parent=47 // pred_region
          %s370 = sand.u32 %s134, 1
          %s371 = scalar_lea.sflag [#allocation9], %s370
          %s372 = sand.u32 %s134, 1
          %s373 = smul.addr %s372, 8
          %s374 = scalar_lea.vmem [#allocation8], %s373
          %376 = dma.done %s371, 128
        $region56: #{tpu_custom_call.1} parent=47 // pred_fallthru
          _
      $region48: #{tpu_custom_call.1} parent=5 // pred_fallthru
        _
    $region6: #{tpu_custom_call.1} parent=1 // loop_footer
      %s26 = sadd.s32 1, %s22
    $region7: #{tpu_custom_call.1} parent=1 // loop_footer_branch
      %21 = sbr.rel target = $region3
    $region8: #{tpu_custom_call.1} parent=1 // loop_exit
      _
    %377 = vsyncpa [#allocation3], 1
    %s378 = scalar_lea.sflag [#allocation3], 1
    %379 = vsyncpa %s378, 1
    %380 = vsyncpa [#allocation6], 1
    %s381 = scalar_lea.sflag [#allocation6], 1
    %382 = vsyncpa %s381, 1
    %383 = vsyncpa [#allocation4], 1
    %s384 = scalar_lea.sflag [#allocation4], 1
    %385 = vsyncpa %s384, 1
    %386 = vsyncpa [#allocation9], 1
    %s387 = scalar_lea.sflag [#allocation9], 1
    %388 = vsyncpa %s387, 1

</llo_original>
